<compile_context>
chip_gen: v7x
topology: tpu7x:2x2x1
jax: 0.10.0
libtpu: 0.0.40
codegen_flags: <defaults>
</compile_context>

<pallas_src>
import numpy as np
import jax
import jax.numpy as jnp
from jax.experimental import pallas as pl
from jax.experimental.pallas import tpu as pltpu

EMBED_DIM = 32
N_ENTITY = 64
N_RELATION = 16
BATCH = 8
DROPOUT_P = 0.5
REG_WEIGHT = 1e-5


def _sum_all(x):
    """Full 2-D sum as lane-reduce then sublane-reduce, kept as a (1,1) tile."""
    return jnp.sum(jnp.sum(x, axis=1, keepdims=True), axis=0, keepdims=True)


def proje_r_loss_kernel(h_idx_ref, t_idx_ref,        # scalar-prefetch (SMEM, (B,))
                        ent_ref,                      # (E, D) VMEM-resident table
                        rel_t_ref,                    # (D, R) pre-transposed relations
                        wh_ref, wt_ref, wb_ref,       # (1, D) each
                        neg_ref,                      # (B, R)
                        drop_ref,                     # (B, D) inverted-dropout mask
                        loss_ref):                    # (1, 1) SMEM output
    batch = neg_ref.shape[0]

    # In-kernel gather of head/tail embedding rows from the resident table
    # (dynamic sublane-start loads; indices come from SMEM scalar prefetch).
    h = jnp.concatenate(
        [ent_ref[pl.ds(h_idx_ref[i], 1), :] for i in range(batch)], axis=0)  # (B, D)
    t = jnp.concatenate(
        [ent_ref[pl.ds(t_idx_ref[i], 1), :] for i in range(batch)], axis=0)  # (B, D)

    # ht = tanh(wh*h + wt*t + wb), then inverted dropout (scale folded in mask).
    ht = jnp.tanh(wh_ref[...] * h + wt_ref[...] * t + wb_ref[...])           # (B, D)
    ht = ht * drop_ref[...]

    # Batched canonical (B,D)x(D,R) matmul on the MXU.
    scores = jnp.dot(ht, rel_t_ref[...], preferred_element_type=jnp.float32)  # (B, R)

    # mask_softmax, kept exactly as the PyTorch reference (including the
    # max(|w| * score) stabilizer) to preserve forward semantics.
    w = neg_ref[...]                                                          # (B, R)
    aw = jnp.abs(w)
    m = jnp.max(aw * scores, axis=1, keepdims=True)                           # (B, 1)
    se = jnp.exp(scores - m)
    ss = jnp.sum(se * aw, axis=1, keepdims=True)                              # (B, 1)
    prob = se * pl.reciprocal(ss, approx=True) * aw

    log_prob = jnp.log(jnp.clip(prob, 1e-10, 1.0))
    y = jnp.maximum(w, 0.0)
    ysum = jnp.sum(y, axis=1, keepdims=True)                                  # (B, 1)
    # Precondition (matches the PyTorch harness): every row has >= 1 positive.
    loss_htr = _sum_all(-(log_prob * y) * pl.reciprocal(ysum, approx=True))   # (1, 1)

    # L1 regularizer over entity table, relation table, weight_h, weight_t
    # (weight_bias intentionally excluded, matching the PyTorch reference).
    reg = (_sum_all(jnp.abs(ent_ref[...]))
           + _sum_all(jnp.abs(rel_t_ref[...]))
           + _sum_all(jnp.abs(wh_ref[...]))
           + _sum_all(jnp.abs(wt_ref[...])))                                  # (1, 1)

    loss_ref[0, 0] = loss_htr[0, 0] + REG_WEIGHT * reg[0, 0]


def make_params():
    bound = 6.0 / np.sqrt(N_ENTITY)
    ent = np.random.RandomState(123).uniform(
        -bound, bound, (N_ENTITY, EMBED_DIM)).astype(np.float32)
    rel = np.random.RandomState(456).uniform(
        -bound, bound, (N_RELATION, EMBED_DIM)).astype(np.float32)
    wh = np.random.RandomState(501).uniform(
        -bound, bound, EMBED_DIM).astype(np.float32)
    wt = np.random.RandomState(502).uniform(
        -bound, bound, EMBED_DIM).astype(np.float32)
    wb = np.zeros(EMBED_DIM, dtype=np.float32)
    return {
        "entity_embedding": jnp.asarray(ent),
        "relation_embedding": jnp.asarray(rel),
        "weight_h": jnp.asarray(wh),
        "weight_t": jnp.asarray(wt),
        "weight_bias": jnp.asarray(wb),
    }


def proje_r_forward(params, triple, neg_sample_r, dropout_key):
    ent = params["entity_embedding"]               # (E, D)
    rel = params["relation_embedding"]             # (R, D)
    n_entity, embed_dim = ent.shape
    n_relation = rel.shape[0]
    batch = triple.shape[0]

    rel_t = rel.T                                  # (D, R): canonical MXU layout
    wh = params["weight_h"].reshape(1, embed_dim)
    wt = params["weight_t"].reshape(1, embed_dim)
    wb = params["weight_bias"].reshape(1, embed_dim)
    neg = neg_sample_r.astype(jnp.float32)         # (B, R)

    h_idx = triple[:, 0].astype(jnp.int32)         # (B,) -> SMEM scalar prefetch
    t_idx = triple[:, 1].astype(jnp.int32)

    # F.dropout(p=0.5, training=True): inverted dropout, scale folded into mask.
    # TODO(synk): dropout RNG stream differs from torch's RNG (stochastic op);
    # kept wrapper-side jax.random rather than in-kernel pltpu PRNG for
    # portability (interpret-mode testing) — negligible cost at this size.
    keep = jax.random.bernoulli(dropout_key, 1.0 - DROPOUT_P, (batch, embed_dim))
    drop_mask = keep.astype(jnp.float32) * (1.0 / (1.0 - DROPOUT_P))

    grid_spec = pltpu.PrefetchScalarGridSpec(
        num_scalar_prefetch=2,
        grid=(1,),                                  # whole batch in one step
        in_specs=[
            pl.BlockSpec((n_entity, embed_dim), lambda i, hi, ti: (0, 0)),   # ent
            pl.BlockSpec((embed_dim, n_relation), lambda i, hi, ti: (0, 0)),  # rel^T
            pl.BlockSpec((1, embed_dim), lambda i, hi, ti: (0, 0)),           # wh
            pl.BlockSpec((1, embed_dim), lambda i, hi, ti: (0, 0)),           # wt
            pl.BlockSpec((1, embed_dim), lambda i, hi, ti: (0, 0)),           # wb
            pl.BlockSpec((batch, n_relation), lambda i, hi, ti: (0, 0)),      # neg
            pl.BlockSpec((batch, embed_dim), lambda i, hi, ti: (0, 0)),       # drop
        ],
        out_specs=pl.BlockSpec(memory_space=pltpu.MemorySpace.SMEM),
    )

    out = pl.pallas_call(
        proje_r_loss_kernel,
        out_shape=jax.ShapeDtypeStruct((1, 1), jnp.float32),
        grid_spec=grid_spec,
        compiler_params=pltpu.CompilerParams(
            dimension_semantics=("arbitrary",)),
    )(h_idx, t_idx, ent, rel_t, wh, wt, wb, neg, drop_mask)
    return out[0, 0]


if __name__ == "__main__":
    params = make_params()

    key = jax.random.PRNGKey(0)
    k1, k2, k3, k4 = jax.random.split(key, 4)
    # triple: (batch, 3) int indices (forward only uses cols 0 and 1)
    triple = jax.random.randint(k1, (BATCH, 3), 0, N_ENTITY, dtype=jnp.int32)
    # neg_sample_r in {-1, 0, +1}, with at least one +1 per row so the
    # normalized positive mask is well defined.
    neg_sample_r = jax.random.choice(
        k2, jnp.asarray([-1.0, 0.0, 1.0], dtype=jnp.float32),
        shape=(BATCH, N_RELATION))
    pos_idx = jax.random.randint(k3, (BATCH,), 0, N_RELATION)
    neg_sample_r = neg_sample_r.at[jnp.arange(BATCH), pos_idx].set(1.0)

    loss = proje_r_forward(params, triple, neg_sample_r, dropout_key=k4)
    loss = jax.block_until_ready(loss)
    assert bool(jnp.isfinite(loss)), "loss is not finite"
    print("KERNEL_OK")
</pallas_src>

<mosaic_0001>
module attributes {stable_mosaic.version = 11 : i64} {
  func.func @proje_r_loss_kernel(%arg0: i32, %arg1: memref<8xi32, #tpu.memory_space<smem>>, %arg2: memref<8xi32, #tpu.memory_space<smem>>, %arg3: memref<64x32xf32, #tpu.memory_space<vmem>>, %arg4: memref<32x16xf32, #tpu.memory_space<vmem>>, %arg5: memref<1x32xf32, #tpu.memory_space<vmem>>, %arg6: memref<1x32xf32, #tpu.memory_space<vmem>>, %arg7: memref<1x32xf32, #tpu.memory_space<vmem>>, %arg8: memref<8x16xf32, #tpu.memory_space<vmem>>, %arg9: memref<8x32xf32, #tpu.memory_space<vmem>>, %arg10: memref<1x1xf32, #tpu.memory_space<smem>>) attributes {dimension_semantics = [#tpu.dimension_semantics<arbitrary>], iteration_bounds = array<i64: 1>, scalar_prefetch = 2 : i64, scratch_operands = 0 : i64, tpu.core_type = #tpu.core_type<tc>, window_params = [{pipeline_mode = #tpu.pipeline_mode<synchronous>, transform_indices = @transform_0, window_bounds = array<i64: 64, 32>}, {pipeline_mode = #tpu.pipeline_mode<synchronous>, transform_indices = @transform_1, window_bounds = array<i64: 32, 16>}, {pipeline_mode = #tpu.pipeline_mode<synchronous>, transform_indices = @transform_2, window_bounds = array<i64: 1, 32>}, {pipeline_mode = #tpu.pipeline_mode<synchronous>, transform_indices = @transform_3, window_bounds = array<i64: 1, 32>}, {pipeline_mode = #tpu.pipeline_mode<synchronous>, transform_indices = @transform_4, window_bounds = array<i64: 1, 32>}, {pipeline_mode = #tpu.pipeline_mode<synchronous>, transform_indices = @transform_5, window_bounds = array<i64: 8, 16>}, {pipeline_mode = #tpu.pipeline_mode<synchronous>, transform_indices = @transform_6, window_bounds = array<i64: 8, 32>}, {transform_indices = @transform_7, window_bounds = array<i64: 1, 1>}]} {
    %c0 = arith.constant 0 : index
    %0 = memref.load %arg1[%c0] : memref<8xi32, #tpu.memory_space<smem>>
    %1 = arith.index_cast %0 : i32 to index
    %c0_0 = arith.constant 0 : index
    %2 = vector.load %arg3[%1, %c0_0] : memref<64x32xf32, #tpu.memory_space<vmem>>, vector<1x32xf32>
    %c1 = arith.constant 1 : index
    %3 = memref.load %arg1[%c1] : memref<8xi32, #tpu.memory_space<smem>>
    %4 = arith.index_cast %3 : i32 to index
    %c0_1 = arith.constant 0 : index
    %5 = vector.load %arg3[%4, %c0_1] : memref<64x32xf32, #tpu.memory_space<vmem>>, vector<1x32xf32>
    %c2 = arith.constant 2 : index
    %6 = memref.load %arg1[%c2] : memref<8xi32, #tpu.memory_space<smem>>
    %7 = arith.index_cast %6 : i32 to index
    %c0_2 = arith.constant 0 : index
    %8 = vector.load %arg3[%7, %c0_2] : memref<64x32xf32, #tpu.memory_space<vmem>>, vector<1x32xf32>
    %c3 = arith.constant 3 : index
    %9 = memref.load %arg1[%c3] : memref<8xi32, #tpu.memory_space<smem>>
    %10 = arith.index_cast %9 : i32 to index
    %c0_3 = arith.constant 0 : index
    %11 = vector.load %arg3[%10, %c0_3] : memref<64x32xf32, #tpu.memory_space<vmem>>, vector<1x32xf32>
    %c4 = arith.constant 4 : index
    %12 = memref.load %arg1[%c4] : memref<8xi32, #tpu.memory_space<smem>>
    %13 = arith.index_cast %12 : i32 to index
    %c0_4 = arith.constant 0 : index
    %14 = vector.load %arg3[%13, %c0_4] : memref<64x32xf32, #tpu.memory_space<vmem>>, vector<1x32xf32>
    %c5 = arith.constant 5 : index
    %15 = memref.load %arg1[%c5] : memref<8xi32, #tpu.memory_space<smem>>
    %16 = arith.index_cast %15 : i32 to index
    %c0_5 = arith.constant 0 : index
    %17 = vector.load %arg3[%16, %c0_5] : memref<64x32xf32, #tpu.memory_space<vmem>>, vector<1x32xf32>
    %c6 = arith.constant 6 : index
    %18 = memref.load %arg1[%c6] : memref<8xi32, #tpu.memory_space<smem>>
    %19 = arith.index_cast %18 : i32 to index
    %c0_6 = arith.constant 0 : index
    %20 = vector.load %arg3[%19, %c0_6] : memref<64x32xf32, #tpu.memory_space<vmem>>, vector<1x32xf32>
    %c7 = arith.constant 7 : index
    %21 = memref.load %arg1[%c7] : memref<8xi32, #tpu.memory_space<smem>>
    %22 = arith.index_cast %21 : i32 to index
    %c0_7 = arith.constant 0 : index
    %23 = vector.load %arg3[%22, %c0_7] : memref<64x32xf32, #tpu.memory_space<vmem>>, vector<1x32xf32>
    %24 = tpu.concatenate %2, %5, %8, %11, %14, %17, %20, %23 in 0 : vector<1x32xf32>, vector<1x32xf32>, vector<1x32xf32>, vector<1x32xf32>, vector<1x32xf32>, vector<1x32xf32>, vector<1x32xf32>, vector<1x32xf32> -> vector<8x32xf32>
    %c0_8 = arith.constant 0 : index
    %25 = memref.load %arg2[%c0_8] : memref<8xi32, #tpu.memory_space<smem>>
    %26 = arith.index_cast %25 : i32 to index
    %c0_9 = arith.constant 0 : index
    %27 = vector.load %arg3[%26, %c0_9] : memref<64x32xf32, #tpu.memory_space<vmem>>, vector<1x32xf32>
    %c1_10 = arith.constant 1 : index
    %28 = memref.load %arg2[%c1_10] : memref<8xi32, #tpu.memory_space<smem>>
    %29 = arith.index_cast %28 : i32 to index
    %c0_11 = arith.constant 0 : index
    %30 = vector.load %arg3[%29, %c0_11] : memref<64x32xf32, #tpu.memory_space<vmem>>, vector<1x32xf32>
    %c2_12 = arith.constant 2 : index
    %31 = memref.load %arg2[%c2_12] : memref<8xi32, #tpu.memory_space<smem>>
    %32 = arith.index_cast %31 : i32 to index
    %c0_13 = arith.constant 0 : index
    %33 = vector.load %arg3[%32, %c0_13] : memref<64x32xf32, #tpu.memory_space<vmem>>, vector<1x32xf32>
    %c3_14 = arith.constant 3 : index
    %34 = memref.load %arg2[%c3_14] : memref<8xi32, #tpu.memory_space<smem>>
    %35 = arith.index_cast %34 : i32 to index
    %c0_15 = arith.constant 0 : index
    %36 = vector.load %arg3[%35, %c0_15] : memref<64x32xf32, #tpu.memory_space<vmem>>, vector<1x32xf32>
    %c4_16 = arith.constant 4 : index
    %37 = memref.load %arg2[%c4_16] : memref<8xi32, #tpu.memory_space<smem>>
    %38 = arith.index_cast %37 : i32 to index
    %c0_17 = arith.constant 0 : index
    %39 = vector.load %arg3[%38, %c0_17] : memref<64x32xf32, #tpu.memory_space<vmem>>, vector<1x32xf32>
    %c5_18 = arith.constant 5 : index
    %40 = memref.load %arg2[%c5_18] : memref<8xi32, #tpu.memory_space<smem>>
    %41 = arith.index_cast %40 : i32 to index
    %c0_19 = arith.constant 0 : index
    %42 = vector.load %arg3[%41, %c0_19] : memref<64x32xf32, #tpu.memory_space<vmem>>, vector<1x32xf32>
    %c6_20 = arith.constant 6 : index
    %43 = memref.load %arg2[%c6_20] : memref<8xi32, #tpu.memory_space<smem>>
    %44 = arith.index_cast %43 : i32 to index
    %c0_21 = arith.constant 0 : index
    %45 = vector.load %arg3[%44, %c0_21] : memref<64x32xf32, #tpu.memory_space<vmem>>, vector<1x32xf32>
    %c7_22 = arith.constant 7 : index
    %46 = memref.load %arg2[%c7_22] : memref<8xi32, #tpu.memory_space<smem>>
    %47 = arith.index_cast %46 : i32 to index
    %c0_23 = arith.constant 0 : index
    %48 = vector.load %arg3[%47, %c0_23] : memref<64x32xf32, #tpu.memory_space<vmem>>, vector<1x32xf32>
    %49 = tpu.concatenate %27, %30, %33, %36, %39, %42, %45, %48 in 0 : vector<1x32xf32>, vector<1x32xf32>, vector<1x32xf32>, vector<1x32xf32>, vector<1x32xf32>, vector<1x32xf32>, vector<1x32xf32>, vector<1x32xf32> -> vector<8x32xf32>
    %c0_24 = arith.constant 0 : index
    %c0_25 = arith.constant 0 : index
    %50 = vector.load %arg5[%c0_24, %c0_25] : memref<1x32xf32, #tpu.memory_space<vmem>>, vector<1x32xf32>
    %51 = vector.broadcast %50 : vector<1x32xf32> to vector<8x32xf32>
    %52 = arith.mulf %51, %24 : vector<8x32xf32>
    %c0_26 = arith.constant 0 : index
    %c0_27 = arith.constant 0 : index
    %53 = vector.load %arg6[%c0_26, %c0_27] : memref<1x32xf32, #tpu.memory_space<vmem>>, vector<1x32xf32>
    %54 = vector.broadcast %53 : vector<1x32xf32> to vector<8x32xf32>
    %55 = arith.mulf %54, %49 : vector<8x32xf32>
    %56 = arith.addf %52, %55 : vector<8x32xf32>
    %c0_28 = arith.constant 0 : index
    %c0_29 = arith.constant 0 : index
    %57 = vector.load %arg7[%c0_28, %c0_29] : memref<1x32xf32, #tpu.memory_space<vmem>>, vector<1x32xf32>
    %58 = vector.broadcast %57 : vector<1x32xf32> to vector<8x32xf32>
    %59 = arith.addf %56, %58 : vector<8x32xf32>
    %60 = math.tanh %59 : vector<8x32xf32>
    %c0_30 = arith.constant 0 : index
    %c0_31 = arith.constant 0 : index
    %61 = vector.load %arg9[%c0_30, %c0_31] : memref<8x32xf32, #tpu.memory_space<vmem>>, vector<8x32xf32>
    %62 = arith.mulf %60, %61 : vector<8x32xf32>
    %c0_32 = arith.constant 0 : index
    %c0_33 = arith.constant 0 : index
    %63 = vector.load %arg4[%c0_32, %c0_33] : memref<32x16xf32, #tpu.memory_space<vmem>>, vector<32x16xf32>
    %cst = arith.constant dense<0.000000e+00> : vector<8x16xf32>
    %64 = tpu.matmul %62, %63, %cst {dimension_numbers = #tpu.dot_dimension_numbers<[1], [0], [0], [1], [0, 0, 1, 1], [], []>} : vector<8x32xf32>, vector<32x16xf32>, vector<8x16xf32> -> vector<8x16xf32>
    %c0_34 = arith.constant 0 : index
    %c0_35 = arith.constant 0 : index
    %65 = vector.load %arg8[%c0_34, %c0_35] : memref<8x16xf32, #tpu.memory_space<vmem>>, vector<8x16xf32>
    %66 = math.absf %65 : vector<8x16xf32>
    %67 = arith.mulf %66, %64 : vector<8x16xf32>
    %cst_36 = arith.constant dense<0xFF800000> : vector<8xf32>
    %68 = vector.multi_reduction <maximumf>, %67, %cst_36 [1] : vector<8x16xf32> to vector<8xf32>
    %69 = vector.shape_cast %68 : vector<8xf32> to vector<8x1xf32>
    %70 = vector.broadcast %69 : vector<8x1xf32> to vector<8x16xf32>
    %71 = arith.subf %64, %70 : vector<8x16xf32>
    %72 = math.exp %71 : vector<8x16xf32>
    %73 = arith.mulf %72, %66 : vector<8x16xf32>
    %cst_37 = arith.constant dense<0.000000e+00> : vector<8xf32>
    %74 = vector.multi_reduction <add>, %73, %cst_37 [1] : vector<8x16xf32> to vector<8xf32>
    %75 = vector.shape_cast %74 : vector<8xf32> to vector<8x1xf32>
    %76 = tpu.reciprocal %75 {approx = true} : vector<8x1xf32> -> vector<8x1xf32>
    %77 = vector.broadcast %76 : vector<8x1xf32> to vector<8x16xf32>
    %78 = arith.mulf %72, %77 : vector<8x16xf32>
    %79 = arith.mulf %78, %66 : vector<8x16xf32>
    %cst_38 = arith.constant 1.000000e-10 : f32
    %cst_39 = arith.constant 1.000000e+00 : f32
    %80 = vector.broadcast %cst_38 : f32 to vector<8x16xf32>
    %81 = arith.maximumf %80, %79 : vector<8x16xf32>
    %82 = vector.broadcast %cst_39 : f32 to vector<8x16xf32>
    %83 = arith.minimumf %82, %81 : vector<8x16xf32>
    %84 = math.log %83 : vector<8x16xf32>
    %cst_40 = arith.constant 0.000000e+00 : f32
    %85 = vector.broadcast %cst_40 : f32 to vector<8x16xf32>
    %86 = arith.maximumf %65, %85 : vector<8x16xf32>
    %cst_41 = arith.constant dense<0.000000e+00> : vector<8xf32>
    %87 = vector.multi_reduction <add>, %86, %cst_41 [1] : vector<8x16xf32> to vector<8xf32>
    %88 = vector.shape_cast %87 : vector<8xf32> to vector<8x1xf32>
    %89 = arith.mulf %84, %86 : vector<8x16xf32>
    %cst_42 = arith.constant 0.000000e+00 : f32
    %90 = vector.broadcast %cst_42 : f32 to vector<8x16xf32>
    %91 = arith.subf %90, %89 : vector<8x16xf32>
    %92 = tpu.reciprocal %88 {approx = true} : vector<8x1xf32> -> vector<8x1xf32>
    %93 = vector.broadcast %92 : vector<8x1xf32> to vector<8x16xf32>
    %94 = arith.mulf %91, %93 : vector<8x16xf32>
    %cst_43 = arith.constant dense<0.000000e+00> : vector<8xf32>
    %95 = vector.multi_reduction <add>, %94, %cst_43 [1] : vector<8x16xf32> to vector<8xf32>
    %96 = vector.shape_cast %95 : vector<8xf32> to vector<8x1xf32>
    %cst_44 = arith.constant dense<0.000000e+00> : vector<1xf32>
    %97 = vector.multi_reduction <add>, %96, %cst_44 [0] : vector<8x1xf32> to vector<1xf32>
    %98 = vector.shape_cast %97 : vector<1xf32> to vector<1x1xf32>
    %c0_45 = arith.constant 0 : index
    %c0_46 = arith.constant 0 : index
    %99 = vector.load %arg3[%c0_45, %c0_46] : memref<64x32xf32, #tpu.memory_space<vmem>>, vector<64x32xf32>
    %100 = math.absf %99 : vector<64x32xf32>
    %cst_47 = arith.constant dense<0.000000e+00> : vector<64xf32>
    %101 = vector.multi_reduction <add>, %100, %cst_47 [1] : vector<64x32xf32> to vector<64xf32>
    %102 = vector.shape_cast %101 : vector<64xf32> to vector<64x1xf32>
    %cst_48 = arith.constant dense<0.000000e+00> : vector<1xf32>
    %103 = vector.multi_reduction <add>, %102, %cst_48 [0] : vector<64x1xf32> to vector<1xf32>
    %104 = vector.shape_cast %103 : vector<1xf32> to vector<1x1xf32>
    %c0_49 = arith.constant 0 : index
    %c0_50 = arith.constant 0 : index
    %105 = vector.load %arg4[%c0_49, %c0_50] : memref<32x16xf32, #tpu.memory_space<vmem>>, vector<32x16xf32>
    %106 = math.absf %105 : vector<32x16xf32>
    %cst_51 = arith.constant dense<0.000000e+00> : vector<32xf32>
    %107 = vector.multi_reduction <add>, %106, %cst_51 [1] : vector<32x16xf32> to vector<32xf32>
    %108 = vector.shape_cast %107 : vector<32xf32> to vector<32x1xf32>
    %cst_52 = arith.constant dense<0.000000e+00> : vector<1xf32>
    %109 = vector.multi_reduction <add>, %108, %cst_52 [0] : vector<32x1xf32> to vector<1xf32>
    %110 = vector.shape_cast %109 : vector<1xf32> to vector<1x1xf32>
    %111 = arith.addf %104, %110 : vector<1x1xf32>
    %c0_53 = arith.constant 0 : index
    %c0_54 = arith.constant 0 : index
    %112 = vector.load %arg5[%c0_53, %c0_54] : memref<1x32xf32, #tpu.memory_space<vmem>>, vector<1x32xf32>
    %113 = math.absf %112 : vector<1x32xf32>
    %cst_55 = arith.constant dense<0.000000e+00> : vector<1xf32>
    %114 = vector.multi_reduction <add>, %113, %cst_55 [1] : vector<1x32xf32> to vector<1xf32>
    %115 = vector.shape_cast %114 : vector<1xf32> to vector<1x1xf32>
    %cst_56 = arith.constant dense<0.000000e+00> : vector<1xf32>
    %116 = vector.multi_reduction <add>, %115, %cst_56 [0] : vector<1x1xf32> to vector<1xf32>
    %117 = vector.shape_cast %116 : vector<1xf32> to vector<1x1xf32>
    %118 = arith.addf %111, %117 : vector<1x1xf32>
    %c0_57 = arith.constant 0 : index
    %c0_58 = arith.constant 0 : index
    %119 = vector.load %arg6[%c0_57, %c0_58] : memref<1x32xf32, #tpu.memory_space<vmem>>, vector<1x32xf32>
    %120 = math.absf %119 : vector<1x32xf32>
    %cst_59 = arith.constant dense<0.000000e+00> : vector<1xf32>
    %121 = vector.multi_reduction <add>, %120, %cst_59 [1] : vector<1x32xf32> to vector<1xf32>
    %122 = vector.shape_cast %121 : vector<1xf32> to vector<1x1xf32>
    %cst_60 = arith.constant dense<0.000000e+00> : vector<1xf32>
    %123 = vector.multi_reduction <add>, %122, %cst_60 [0] : vector<1x1xf32> to vector<1xf32>
    %124 = vector.shape_cast %123 : vector<1xf32> to vector<1x1xf32>
    %125 = arith.addf %118, %124 : vector<1x1xf32>
    %126 = vector.extract %98[0, 0] : f32 from vector<1x1xf32>
    %127 = vector.extract %125[0, 0] : f32 from vector<1x1xf32>
    %cst_61 = arith.constant 9.99999974E-6 : f32
    %128 = arith.mulf %cst_61, %127 : f32
    %129 = arith.addf %126, %128 : f32
    %c0_62 = arith.constant 0 : index
    %c0_63 = arith.constant 0 : index
    %130 = memref.load %arg10[%c0_62, %c0_63] : memref<1x1xf32, #tpu.memory_space<smem>>
    memref.store %129, %arg10[%c0_62, %c0_63] : memref<1x1xf32, #tpu.memory_space<smem>>
    return
  }
  func.func @transform_0(%arg0: i32, %arg1: memref<8xi32, #tpu.memory_space<smem>>, %arg2: memref<8xi32, #tpu.memory_space<smem>>) -> (i32, i32) {
    %c0_i32 = arith.constant 0 : i32
    %c0_i32_0 = arith.constant 0 : i32
    %c0_i32_1 = arith.constant 0 : i32
    return %c0_i32, %c0_i32_0 : i32, i32
  }
  func.func @transform_1(%arg0: i32, %arg1: memref<8xi32, #tpu.memory_space<smem>>, %arg2: memref<8xi32, #tpu.memory_space<smem>>) -> (i32, i32) {
    %c0_i32 = arith.constant 0 : i32
    %c0_i32_0 = arith.constant 0 : i32
    %c0_i32_1 = arith.constant 0 : i32
    return %c0_i32, %c0_i32_0 : i32, i32
  }
  func.func @transform_2(%arg0: i32, %arg1: memref<8xi32, #tpu.memory_space<smem>>, %arg2: memref<8xi32, #tpu.memory_space<smem>>) -> (i32, i32) {
    %c0_i32 = arith.constant 0 : i32
    %c0_i32_0 = arith.constant 0 : i32
    %c0_i32_1 = arith.constant 0 : i32
    return %c0_i32, %c0_i32_0 : i32, i32
  }
  func.func @transform_3(%arg0: i32, %arg1: memref<8xi32, #tpu.memory_space<smem>>, %arg2: memref<8xi32, #tpu.memory_space<smem>>) -> (i32, i32) {
    %c0_i32 = arith.constant 0 : i32
    %c0_i32_0 = arith.constant 0 : i32
    %c0_i32_1 = arith.constant 0 : i32
    return %c0_i32, %c0_i32_0 : i32, i32
  }
  func.func @transform_4(%arg0: i32, %arg1: memref<8xi32, #tpu.memory_space<smem>>, %arg2: memref<8xi32, #tpu.memory_space<smem>>) -> (i32, i32) {
    %c0_i32 = arith.constant 0 : i32
    %c0_i32_0 = arith.constant 0 : i32
    %c0_i32_1 = arith.constant 0 : i32
    return %c0_i32, %c0_i32_0 : i32, i32
  }
  func.func @transform_5(%arg0: i32, %arg1: memref<8xi32, #tpu.memory_space<smem>>, %arg2: memref<8xi32, #tpu.memory_space<smem>>) -> (i32, i32) {
    %c0_i32 = arith.constant 0 : i32
    %c0_i32_0 = arith.constant 0 : i32
    %c0_i32_1 = arith.constant 0 : i32
    return %c0_i32, %c0_i32_0 : i32, i32
  }
  func.func @transform_6(%arg0: i32, %arg1: memref<8xi32, #tpu.memory_space<smem>>, %arg2: memref<8xi32, #tpu.memory_space<smem>>) -> (i32, i32) {
    %c0_i32 = arith.constant 0 : i32
    %c0_i32_0 = arith.constant 0 : i32
    %c0_i32_1 = arith.constant 0 : i32
    return %c0_i32, %c0_i32_0 : i32, i32
  }
  func.func @transform_7(%arg0: i32, %arg1: memref<8xi32, #tpu.memory_space<smem>>, %arg2: memref<8xi32, #tpu.memory_space<smem>>) -> (i32, i32) {
    %c0_i32 = arith.constant 0 : i32
    %c0_i32_0 = arith.constant 0 : i32
    %c0_i32_1 = arith.constant 0 : i32
    return %c0_i32, %c0_i32_0 : i32, i32
  }
}

</mosaic_0001>

<llo_original>
// kernel: tpu_custom_call.1
$region0: #{tpu_custom_call.1}
  #allocation0 [shape = 'u32[]', space=smem, size = 0x4, offset = 0x4, fixed_abs, tag = 'smem constant byte address 0x4 - core index']
  #allocation1 [shape = 'u32[144,128]{1,0:T(1,128)}', space=vmem, size = 0x12000, scoped, tag = 'internal scratch']
  #allocation2 [shape = 's32[1]{0}', space=sflag, size = 0x4, scoped, tag = 'scoped memory for tpu_custom_call.1']
  #allocation3 [shape = 'u8[512]{0}', space=smem, size = 0x200, scoped, tag = 'prefetched SMEM operand 0']
  #allocation4 [shape = 'u8[512]{0}', space=smem, size = 0x200, scoped, tag = 'prefetched SMEM operand 1']
  %s0 = inlined_call_operand.vmem [shape: s32[8], index: 0, kind: input, shape index: {}]
  %s1 = inlined_call_operand.vmem [shape: s32[8], index: 1, kind: input, shape index: {}]
  %s2 = inlined_call_operand.vmem [shape: f32[64,32], index: 2, kind: input, shape index: {}]
  %s3 = inlined_call_operand.vmem [shape: f32[32,16], index: 3, kind: input, shape index: {}]
  %s4 = inlined_call_operand.vmem [shape: f32[1,32], index: 4, kind: input, shape index: {}]
  %s5 = inlined_call_operand.vmem [shape: f32[1,32], index: 5, kind: input, shape index: {}]
  %s6 = inlined_call_operand.vmem [shape: f32[1,32], index: 6, kind: input, shape index: {}]
  %s7 = inlined_call_operand.vmem [shape: f32[8,16], index: 7, kind: input, shape index: {}]
  %s8 = inlined_call_operand.vmem [shape: f32[8,32], index: 8, kind: input, shape index: {}]
  %s9 = inlined_call_operand.hbm [shape: f32[1,1], index: 9, kind: output, shape index: {}]
  %s10 = sld [smem:[#allocation0]]
  $region38: #{tpu_custom_call.1} parent=0
    _
  %s12 = ssub.s32 1, %s10
  %s13 = scalar_select 0, %s12, %s10
  %s14 = sshll.u32 %s0, 4
  %s15 = int_to_ptr.vmem [resolvable:$true] %s14
  %17 = dma.vmem_to_smem %s15, 16, [#allocation3], [#allocation2]
  %s18 = sshll.u32 %s1, 4
  %s19 = int_to_ptr.vmem [resolvable:$true] %s18
  %21 = dma.vmem_to_smem %s19, 16, [#allocation4], [#allocation2]
  %22 = dma.done [#allocation2], 32
  %23 = sfence
  $region1: #{tpu_custom_call.1} parent=0
    #allocation5 [shape = 'u8[512]{0}', space=smem, size = 0x200, scoped, tag = 'output window, operand 0, single buffered']
    #allocation6 [shape = 's32[1]{0}', space=sflag, size = 0x4, scoped, tag = 'scoped memory for tpu_custom_call.1']
    %24 = vsyncpa [#allocation6], 0
    // Predicated region
    $region2: #{tpu_custom_call.1} parent=1 // pred_check
      _
    $region3: #{tpu_custom_call.1} parent=1 // pred_check_branch
      %26 = sbr.rel (0) target = $region5
    $region4: #{tpu_custom_call.1} parent=1 // pred_region
      _
    $region5: #{tpu_custom_call.1} parent=1 // pred_fallthru
      _
    // Predicated region
    $region6: #{tpu_custom_call.1} parent=1 // pred_check
      _
    $region7: #{tpu_custom_call.1} parent=1 // pred_check_branch
      %28 = sbr.rel (0) target = $region9
    $region8: #{tpu_custom_call.1} parent=1 // pred_region
      _
    $region9: #{tpu_custom_call.1} parent=1 // pred_fallthru
      _
    // Predicated region
    $region10: #{tpu_custom_call.1} parent=1 // pred_check
      _
    $region11: #{tpu_custom_call.1} parent=1 // pred_check_branch
      %30 = sbr.rel (0) target = $region13
    $region12: #{tpu_custom_call.1} parent=1 // pred_region
      _
    $region13: #{tpu_custom_call.1} parent=1 // pred_fallthru
      _
    // Predicated region
    $region14: #{tpu_custom_call.1} parent=1 // pred_check
      _
    $region15: #{tpu_custom_call.1} parent=1 // pred_check_branch
      %32 = sbr.rel (0) target = $region17
    $region16: #{tpu_custom_call.1} parent=1 // pred_region
      _
    $region17: #{tpu_custom_call.1} parent=1 // pred_fallthru
      _
    // Predicated region
    $region18: #{tpu_custom_call.1} parent=1 // pred_check
      _
    $region19: #{tpu_custom_call.1} parent=1 // pred_check_branch
      %34 = sbr.rel (0) target = $region21
    $region20: #{tpu_custom_call.1} parent=1 // pred_region
      _
    $region21: #{tpu_custom_call.1} parent=1 // pred_fallthru
      _
    // Predicated region
    $region22: #{tpu_custom_call.1} parent=1 // pred_check
      _
    $region23: #{tpu_custom_call.1} parent=1 // pred_check_branch
      %36 = sbr.rel (0) target = $region25
    $region24: #{tpu_custom_call.1} parent=1 // pred_region
      _
    $region25: #{tpu_custom_call.1} parent=1 // pred_fallthru
      _
    // Predicated region
    $region26: #{tpu_custom_call.1} parent=1 // pred_check
      _
    $region27: #{tpu_custom_call.1} parent=1 // pred_check_branch
      %38 = sbr.rel (0) target = $region29
    $region28: #{tpu_custom_call.1} parent=1 // pred_region
      _
    $region29: #{tpu_custom_call.1} parent=1 // pred_fallthru
      _
    %s39 = sld [smem:[#allocation3]]
    %s40 = scalar_lea.vmem %s2, %s39
    %v41 = vld [vmem:[%s40] sm:$0x1]
    %s42 = sld [smem:[#allocation3 + $0x1]]
    %s43 = scalar_lea.vmem %s2, %s42
    %v44 = vld [vmem:[%s43] sm:$0x1]
    %s45 = sld [smem:[#allocation3 + $0x2]]
    %s46 = scalar_lea.vmem %s2, %s45
    %v47 = vld [vmem:[%s46] sm:$0x1]
    %s48 = sld [smem:[#allocation3 + $0x3]]
    %s49 = scalar_lea.vmem %s2, %s48
    %v50 = vld [vmem:[%s49] sm:$0x1]
    %s51 = sld [smem:[#allocation3 + $0x4]]
    %s52 = scalar_lea.vmem %s2, %s51
    %v53 = vld [vmem:[%s52] sm:$0x1]
    %s54 = sld [smem:[#allocation3 + $0x5]]
    %s55 = scalar_lea.vmem %s2, %s54
    %v56 = vld [vmem:[%s55] sm:$0x1]
    %s57 = sld [smem:[#allocation3 + $0x6]]
    %s58 = scalar_lea.vmem %s2, %s57
    %v59 = vld [vmem:[%s58] sm:$0x1]
    %s60 = sld [smem:[#allocation3 + $0x7]]
    %s61 = scalar_lea.vmem %s2, %s60
    %v62 = vld [vmem:[%s61] sm:$0x1]
    %v64 = vrot.slane %v44, 7
    %v67 = vrot.slane %v47, 6
    %v70 = vrot.slane %v50, 5
    %v73 = vrot.slane %v53, 4
    %v76 = vrot.slane %v56, 3
    %v79 = vrot.slane %v59, 2
    %v82 = vrot.slane %v62, 1
    %vm84 = vcmask 1040384
    %v85 = vsel %vm84, %v41, %v64
    %vm86 = vcmask 1041408
    %v87 = vsel %vm86, %v85, %v67
    %vm88 = vcmask 1042432
    %v89 = vsel %vm88, %v87, %v70
    %vm90 = vcmask 1043456
    %v91 = vsel %vm90, %v89, %v73
    %vm92 = vcmask 1044480
    %v93 = vsel %vm92, %v91, %v76
    %vm94 = vcmask 1045504
    %v95 = vsel %vm94, %v93, %v79
    %vm96 = vcmask 1046528
    %v97 = vsel %vm96, %v95, %v82
    %s98 = sld [smem:[#allocation4]]
    %s99 = scalar_lea.vmem %s2, %s98
    %v100 = vld [vmem:[%s99] sm:$0x1]
    %s101 = sld [smem:[#allocation4 + $0x1]]
    %s102 = scalar_lea.vmem %s2, %s101
    %v103 = vld [vmem:[%s102] sm:$0x1]
    %s104 = sld [smem:[#allocation4 + $0x2]]
    %s105 = scalar_lea.vmem %s2, %s104
    %v106 = vld [vmem:[%s105] sm:$0x1]
    %s107 = sld [smem:[#allocation4 + $0x3]]
    %s108 = scalar_lea.vmem %s2, %s107
    %v109 = vld [vmem:[%s108] sm:$0x1]
    %s110 = sld [smem:[#allocation4 + $0x4]]
    %s111 = scalar_lea.vmem %s2, %s110
    %v112 = vld [vmem:[%s111] sm:$0x1]
    %s113 = sld [smem:[#allocation4 + $0x5]]
    %s114 = scalar_lea.vmem %s2, %s113
    %v115 = vld [vmem:[%s114] sm:$0x1]
    %s116 = sld [smem:[#allocation4 + $0x6]]
    %s117 = scalar_lea.vmem %s2, %s116
    %v118 = vld [vmem:[%s117] sm:$0x1]
    %s119 = sld [smem:[#allocation4 + $0x7]]
    %s120 = scalar_lea.vmem %s2, %s119
    %v121 = vld [vmem:[%s120] sm:$0x1]
    %v123 = vrot.slane %v103, 7
    %v126 = vrot.slane %v106, 6
    %v129 = vrot.slane %v109, 5
    %v132 = vrot.slane %v112, 4
    %v135 = vrot.slane %v115, 3
    %v138 = vrot.slane %v118, 2
    %v141 = vrot.slane %v121, 1
    %v143 = vsel %vm84, %v100, %v123
    %v144 = vsel %vm86, %v143, %v126
    %v145 = vsel %vm88, %v144, %v129
    %v146 = vsel %vm90, %v145, %v132
    %v147 = vsel %vm92, %v146, %v135
    %v148 = vsel %vm94, %v147, %v138
    %v149 = vsel %vm96, %v148, %v141
    %v150 = vld [vmem:[%s4] sm:$0x1]
    %v152 = vlaneseq
    %v153 = vshrl.u32 %v152, 7
    %v154 = vsub.s32 0, %v153
    %v155 = vrot.slane %v150, %v154
    %v157 = vmul.f32 %v155, %v97
    %v158 = vld [vmem:[%s5] sm:$0x1]
    %v160 = vlaneseq
    %v161 = vshrl.u32 %v160, 7
    %v162 = vsub.s32 0, %v161
    %v163 = vrot.slane %v158, %v162
    %v165 = vmul.f32 %v163, %v149
    %v166 = vadd.f32 %v157, %v165
    %v167 = vld [vmem:[%s6] sm:$0x1]
    %v169 = vlaneseq
    %v170 = vshrl.u32 %v169, 7
    %v171 = vsub.s32 0, %v170
    %v172 = vrot.slane %v167, %v171
    %v174 = vadd.f32 %v166, %v172
    %v175 = vtanh.pop %v174
    %v176 = vld [vmem:[%s8] sm:$0xff]
    %v177 = vmul.f32 %v175, %v176
    %v178 = vld [vmem:[%s3] sm:$0xff]
    %v179 = vld [vmem:[%s3 + $0x8] sm:$0xff]
    %v180 = vld [vmem:[%s3 + $0x10] sm:$0xff]
    %v181 = vld [vmem:[%s3 + $0x18] sm:$0xff]
    %vm182 = vcmask 261120
    %v184 = vsel %vm182, %v177, 0
    %186 = vmatprep.subr.mxu0 0.0
    %187 = vmatpush1.msra.mxu0 %v178
    %188 = vmatprep.subr.mxu0 0.0
    %189 = vmatpush1.msra.mxu0 %v179
    %190 = vmatprep.subr.mxu0 0.0
    %191 = vmatpush1.msra.mxu0 %v180
    %192 = vmatprep.subr.mxu0 0.0
    %193 = vmatpush1.msra.mxu0 %v181
    %194 = vmatprep.subr.mxu0 0.0
    %195 = vmatpush1.msra.mxu0 0.0
    %196 = vmatprep.subr.mxu0 0.0
    %197 = vmatpush1.msra.mxu0 0.0
    %198 = vmatprep.subr.mxu0 0.0
    %199 = vmatpush1.msra.mxu0 0.0
    %200 = vmatprep.subr.mxu0 0.0
    %201 = vmatpush1.msra.mxu0 0.0
    %202 = vmatprep.subr.mxu0 0.0
    %203 = vmatpush1.msra.mxu0 0.0
    %204 = vmatprep.subr.mxu0 0.0
    %205 = vmatpush1.msra.mxu0 0.0
    %206 = vmatprep.subr.mxu0 0.0
    %207 = vmatpush1.msra.mxu0 0.0
    %208 = vmatprep.subr.mxu0 0.0
    %209 = vmatpush1.msra.mxu0 0.0
    %210 = vmatprep.subr.mxu0 0.0
    %211 = vmatpush1.msra.mxu0 0.0
    %212 = vmatprep.subr.mxu0 0.0
    %213 = vmatpush1.msra.mxu0 0.0
    %214 = vmatprep.subr.mxu0 0.0
    %215 = vmatpush1.msra.mxu0 0.0
    %216 = vmatprep.subr.mxu0 0.0
    %217 = vmatpush1.msra.mxu0 0.0
    %218 = vmatprep.subr.mxu0 0.0
    %219 = vmatpush1.msra.mxu0 0.0
    %220 = vmatprep.subr.mxu0 0.0
    %221 = vmatpush1.msra.mxu0 0.0
    %222 = vmatprep.subr.mxu0 0.0
    %223 = vmatpush1.msra.mxu0 0.0
    %224 = vmatprep.subr.mxu0 0.0
    %225 = vmatpush1.msra.mxu0 0.0
    %226 = vmatprep.subr.mxu0 0.0
    %227 = vmatpush1.msra.mxu0 0.0
    %228 = vmatprep.subr.mxu0 0.0
    %229 = vmatpush1.msra.mxu0 0.0
    %230 = vmatprep.subr.mxu0 0.0
    %231 = vmatpush1.msra.mxu0 0.0
    %232 = vmatprep.subr.mxu0 0.0
    %233 = vmatpush1.msra.mxu0 0.0
    %234 = vmatprep.subr.mxu0 0.0
    %235 = vmatpush1.msra.mxu0 0.0
    %236 = vmatprep.subr.mxu0 0.0
    %237 = vmatpush1.msra.mxu0 0.0
    %238 = vmatprep.subr.mxu0 0.0
    %239 = vmatpush1.msra.mxu0 0.0
    %240 = vmatprep.subr.mxu0 0.0
    %241 = vmatpush1.msra.mxu0 0.0
    %242 = vmatprep.subr.mxu0 0.0
    %243 = vmatpush1.msra.mxu0 0.0
    %244 = vmatprep.subr.mxu0 0.0
    %245 = vmatpush1.msra.mxu0 0.0
    %246 = vmatprep.subr.mxu0 0.0
    %247 = vmatpush1.msra.mxu0 0.0
    %248 = vmatprep.subr.mxu0 0.0
    %249 = vmatpush1.msra.mxu0 0.0
    %250 = vmatprep.mubr.f32.mxu0 0.0
    %251 = vmatmul.mubr.f32.gmra.mrb[0].mxu0 %v184
    %v252 = vpop.f32.mrb[0].mxu0
    %v253 = vadd.f32 0.0, %v252
    %v254 = vpop.f32.mrb[0].mxu0
    %255 = vdwg.mxu0
    %v256 = vld [vmem:[%s7] sm:$0xff]
    %v257 = vand.u32 2147483647, %v256
    %v258 = vmul.f32 %v257, %v253
    %vm259 = vcmask 130048
    %v260 = vsel %vm259, %v258, -inf
    %261 = vmax.xlane.f32.xlu0 %v260
    %v262 = vpop.xlane.xlu0 %261
    %v263 = vsub.f32 %v253, %v262
    %v264 = vmul.f32 %v263, 1.442695
    %v265 = vpow.pop %v264
    %v266 = vmul.f32 %v265, %v257
    %v267 = vsel %vm259, %v266, 0.0
    %268 = vadd.xlane.f32.xlu0 %v267
    %v269 = vpop.xlane.xlu0 %268
    %v270 = vrcp.pop %v269
    %v271 = vmul.f32 %v265, %v270
    %v272 = vmul.f32 %v271, %v257
    %v273 = vmax.f32 %v272, 1e-10
    %v274 = vmin.f32 %v273, 1.0
    %v275 = vlog2.pop %v274
    %v276 = vmul.f32 %v275, 0.6931472
    %v277 = vmax.f32 %v256, 0.0
    %v278 = vsel %vm259, %v277, 0.0
    %279 = vadd.xlane.f32.xlu0 %v278
    %v280 = vpop.xlane.xlu0 %279
    %v281 = vmul.f32 %v276, %v277
    %v282 = vsub.f32 0.0, %v281
    %v283 = vrcp.pop %v280
    %v284 = vmul.f32 %v282, %v283
    %v285 = vsel %vm259, %v284, 0.0
    %286 = vadd.xlane.f32.xlu0 %v285
    %v287 = vpop.xlane.xlu0 %286
    %v288 = vrot.slane %v287, 4
    %v289 = vadd.f32 %v287, %v288
    %v290 = vrot.slane %v289, 2
    %v291 = vadd.f32 %v289, %v290
    %v292 = vrot.slane %v291, 1
    %v293 = vadd.f32 %v291, %v292
    %v294 = vld [vmem:[%s2] sm:$0xff]
    %v295 = vld [vmem:[%s2 + $0x8] sm:$0xff]
    %v296 = vld [vmem:[%s2 + $0x10] sm:$0xff]
    %v297 = vld [vmem:[%s2 + $0x18] sm:$0xff]
    %v298 = vld [vmem:[%s2 + $0x20] sm:$0xff]
    %v299 = vld [vmem:[%s2 + $0x28] sm:$0xff]
    %v300 = vld [vmem:[%s2 + $0x30] sm:$0xff]
    %v301 = vld [vmem:[%s2 + $0x38] sm:$0xff]
    %v302 = vand.u32 2147483647, %v294
    %v303 = vand.u32 2147483647, %v295
    %v304 = vand.u32 2147483647, %v296
    %v305 = vand.u32 2147483647, %v297
    %v306 = vand.u32 2147483647, %v298
    %v307 = vand.u32 2147483647, %v299
    %v308 = vand.u32 2147483647, %v300
    %v309 = vand.u32 2147483647, %v301
    %v310 = vsel %vm182, %v302, 0.0
    %311 = vadd.xlane.f32.xlu0 %v310
    %v312 = vpop.xlane.xlu0 %311
    %v313 = vsel %vm182, %v303, 0.0
    %314 = vadd.xlane.f32.xlu0 %v313
    %v315 = vpop.xlane.xlu0 %314
    %v316 = vsel %vm182, %v304, 0.0
    %317 = vadd.xlane.f32.xlu0 %v316
    %v318 = vpop.xlane.xlu0 %317
    %v319 = vsel %vm182, %v305, 0.0
    %320 = vadd.xlane.f32.xlu0 %v319
    %v321 = vpop.xlane.xlu0 %320
    %v322 = vsel %vm182, %v306, 0.0
    %323 = vadd.xlane.f32.xlu0 %v322
    %v324 = vpop.xlane.xlu0 %323
    %v325 = vsel %vm182, %v307, 0.0
    %326 = vadd.xlane.f32.xlu0 %v325
    %v327 = vpop.xlane.xlu0 %326
    %v328 = vsel %vm182, %v308, 0.0
    %329 = vadd.xlane.f32.xlu0 %v328
    %v330 = vpop.xlane.xlu0 %329
    %v331 = vsel %vm182, %v309, 0.0
    %332 = vadd.xlane.f32.xlu0 %v331
    %v333 = vpop.xlane.xlu0 %332
    %v334 = vadd.f32 %v312, %v315
    %v335 = vadd.f32 %v334, %v318
    %v336 = vadd.f32 %v335, %v321
    %v337 = vadd.f32 %v336, %v324
    %v338 = vadd.f32 %v337, %v327
    %v339 = vadd.f32 %v338, %v330
    %v340 = vadd.f32 %v339, %v333
    %v341 = vrot.slane %v340, 4
    %v342 = vadd.f32 %v340, %v341
    %v343 = vrot.slane %v342, 2
    %v344 = vadd.f32 %v342, %v343
    %v345 = vrot.slane %v344, 1
    %v346 = vadd.f32 %v344, %v345
    %v347 = vand.u32 2147483647, %v178
    %v348 = vand.u32 2147483647, %v179
    %v349 = vand.u32 2147483647, %v180
    %v350 = vand.u32 2147483647, %v181
    %v351 = vsel %vm259, %v347, 0.0
    %352 = vadd.xlane.f32.xlu0 %v351
    %v353 = vpop.xlane.xlu0 %352
    %v354 = vsel %vm259, %v348, 0.0
    %355 = vadd.xlane.f32.xlu0 %v354
    %v356 = vpop.xlane.xlu0 %355
    %v357 = vsel %vm259, %v349, 0.0
    %358 = vadd.xlane.f32.xlu0 %v357
    %v359 = vpop.xlane.xlu0 %358
    %v360 = vsel %vm259, %v350, 0.0
    %361 = vadd.xlane.f32.xlu0 %v360
    %v362 = vpop.xlane.xlu0 %361
    %v363 = vadd.f32 %v353, %v356
    %v364 = vadd.f32 %v363, %v359
    %v365 = vadd.f32 %v364, %v362
    %v366 = vrot.slane %v365, 4
    %v367 = vadd.f32 %v365, %v366
    %v368 = vrot.slane %v367, 2
    %v369 = vadd.f32 %v367, %v368
    %v370 = vrot.slane %v369, 1
    %v371 = vadd.f32 %v369, %v370
    %v372 = vadd.f32 %v346, %v371
    %v373 = vand.u32 2147483647, %v150
    %vm374 = vcmask 253952
    %v375 = vsel %vm374, %v373, 0.0
    %376 = vadd.xlane.f32.xlu0 %v375
    %v377 = vpop.xlane.xlu0 %376
    %v378 = vadd.f32 %v377, 0.0
    %v379 = vadd.f32 %v372, %v378
    %v380 = vand.u32 2147483647, %v158
    %v381 = vsel %vm374, %v380, 0.0
    %382 = vadd.xlane.f32.xlu0 %v381
    %v383 = vpop.xlane.xlu0 %382
    %v384 = vadd.f32 %v383, 0.0
    %v385 = vadd.f32 %v379, %v384
    %s386 = vtos %v293
    %s387 = vtos %v385
    %s388 = smul.f32 %s387, 1e-05
    %s389 = sadd.f32 %s386, %s388
    %s390 = scalar_lea.smem [#allocation5], 0
    %391 = sst [smem:[%s390]] %s389
    // Predicated region
    $region30: #{tpu_custom_call.1} parent=1 // pred_check
      _
    $region31: #{tpu_custom_call.1} parent=1 // pred_check_branch
      %393 = sbr.rel (0) target = $region33
    $region32: #{tpu_custom_call.1} parent=1 // pred_region
      %s395 = ssub.s32 16, 16
      %396 = vsyncadd [#allocation6], %s395
      %399 = dma.smem_to_hbm [#allocation5], 16, %s9, [#allocation6]
    $region33: #{tpu_custom_call.1} parent=1 // pred_fallthru
      _
    // Predicated region
    $region34: #{tpu_custom_call.1} parent=1 // pred_check
      _
    $region35: #{tpu_custom_call.1} parent=1 // pred_check_branch
      %401 = sbr.rel (0) target = $region37
    $region36: #{tpu_custom_call.1} parent=1 // pred_region
      %402 = dma.done [#allocation6], 16
    $region37: #{tpu_custom_call.1} parent=1 // pred_fallthru
      _
    %403 = sfence
    %404 = vsyncpa [#allocation6], 1

</llo_original>
